<compile_context>
chip_gen: v6e
topology: v6e:2x2x1
jax: 0.10.0
libtpu: 0.0.40
codegen_flags: <defaults>
</compile_context>

<pallas_src>
import jax
import jax.numpy as jnp
from jax import lax
from jax.experimental import pallas as pl
from jax.experimental.pallas import tpu as pltpu


def _round_up(x, m):
    return (x + m - 1) // m * m


def _policy_kernel(x_ref,
                   w1_ref, b1_ref,
                   w2_ref, b2_ref,
                   w3_ref, b3_ref,
                   w4_ref, b4_ref,
                   out_ref):
    # x_ref: (5, TILE_B) -- batch on the lane axis.
    x = x_ref[...]

    h = jnp.dot(w1_ref[...], x, preferred_element_type=jnp.float32) + b1_ref[...]
    h = jnp.maximum(h, 0.0)

    h = jnp.dot(w2_ref[...], h, preferred_element_type=jnp.float32) + b2_ref[...]
    h = jnp.maximum(h, 0.0)

    h = jnp.dot(w3_ref[...], h, preferred_element_type=jnp.float32) + b3_ref[...]
    h = jnp.maximum(h, 0.0)

    logits = jnp.dot(w4_ref[...], h, preferred_element_type=jnp.float32) + b4_ref[...]

    # argmax over the action (sublane) axis, first occurrence on ties:
    # iota rows + max/where/min lowers cleanly on TPU.
    A, TB = logits.shape
    row = lax.broadcasted_iota(jnp.int32, (A, TB), 0)
    maxv = jnp.max(logits, axis=0, keepdims=True)
    cand = jnp.where(logits == maxv, row, jnp.int32(A))
    out_ref[...] = jnp.min(cand, axis=0, keepdims=True)   # (1, TILE_B), lane-dense


def policy_forward(x, params, tile_b=512):
    """x: (B, 5) float32.  params: w1..w4 as (out, in), b1..b4 as (out, 1).

    Returns (B,) int32 == torch.argmax(logits, dim=1).
    """
    B = x.shape[0]
    A = params["w4"].shape[0]

    # Pick a lane-aligned batch tile; pad B up so every tile is full.
    if B <= tile_b:
        tb = max(128, _round_up(B, 128))
    else:
        tb = tile_b
    B_pad = _round_up(B, tb)
    grid = (B_pad // tb,)

    # Batch on the lane axis; padded columns are zeros (results sliced off).
    x_t = jnp.pad(x.T, ((0, 0), (0, B_pad - B)))          # (5, B_pad)

    def const_spec(shape):
        return pl.BlockSpec(shape, lambda i: (0, 0))

    in_specs = [
        pl.BlockSpec((5, tb), lambda i: (0, i)),           # x tile, pipelined
        const_spec(params["w1"].shape), const_spec(params["b1"].shape),
        const_spec(params["w2"].shape), const_spec(params["b2"].shape),
        const_spec(params["w3"].shape), const_spec(params["b3"].shape),
        const_spec(params["w4"].shape), const_spec(params["b4"].shape),
    ]
    out_specs = pl.BlockSpec((1, tb), lambda i: (0, i))    # lane-dense output

    flops = 2 * B_pad * (5 * 64 + 64 * 32 + 32 * 32 + 32 * A)
    param_bytes = sum(int(p.size) * 4 for p in params.values())
    bytes_accessed = int(x_t.size) * 4 + B_pad * 4 + param_bytes
    cost = pl.CostEstimate(flops=flops, transcendentals=0,
                           bytes_accessed=int(bytes_accessed))

    out = pl.pallas_call(
        _policy_kernel,
        out_shape=jax.ShapeDtypeStruct((1, B_pad), jnp.int32),
        grid=grid,
        in_specs=in_specs,
        out_specs=out_specs,
        compiler_params=pltpu.CompilerParams(
            dimension_semantics=("parallel",)),            # 2 TCs on v7x
        cost_estimate=cost,
    )(x_t,
      params["w1"], params["b1"],
      params["w2"], params["b2"],
      params["w3"], params["b3"],
      params["w4"], params["b4"])

    return out[0, :B]                                      # (B,) int32


def init_params(key, action_size):
    """Deterministic synthetic init; PyTorch layout (out,in) / (out,1)."""
    dims = [(5, 64), (64, 32), (32, 32), (32, action_size)]
    params = {}
    keys = jax.random.split(key, 2 * len(dims))
    for i, (din, dout) in enumerate(dims):
        bound = 1.0 / jnp.sqrt(din)
        w = jax.random.uniform(keys[2 * i], (dout, din),
                               minval=-bound, maxval=bound, dtype=jnp.float32)
        b = jax.random.uniform(keys[2 * i + 1], (dout, 1),
                               minval=-bound, maxval=bound, dtype=jnp.float32)
        params[f"w{i + 1}"] = w
        params[f"b{i + 1}"] = b
    return params


if __name__ == "__main__":
    key = jax.random.PRNGKey(0)
    k_x, k_p = jax.random.split(key)

    batch = 8          # small demo batch (for large B, use tile_b=512 tiles)
    action_size = 4

    x = jax.random.normal(k_x, (batch, 5), dtype=jnp.float32)
    params = init_params(k_p, action_size)

    actions = policy_forward(x, params)
    jax.block_until_ready(actions)

    # Pure-JAX reference check (same math, row-major layout).
    h = x
    for i in range(1, 4):
        h = jnp.maximum(h @ params[f"w{i}"].T + params[f"b{i}"].T, 0.0)
    logits = h @ params["w4"].T + params["b4"].T
    ref = jnp.argmax(logits, axis=1).astype(jnp.int32)
    assert actions.shape == (batch,)
    assert (actions == ref).all(), (actions, ref)

    print("KERNEL_OK")
</pallas_src>

<mosaic_0001>
module attributes {stable_mosaic.version = 11 : i64} {
  func.func @_policy_kernel(%arg0: i32, %arg1: memref<5x128xf32, #tpu.memory_space<vmem>>, %arg2: memref<64x5xf32, #tpu.memory_space<vmem>>, %arg3: memref<64x1xf32, #tpu.memory_space<vmem>>, %arg4: memref<32x64xf32, #tpu.memory_space<vmem>>, %arg5: memref<32x1xf32, #tpu.memory_space<vmem>>, %arg6: memref<32x32xf32, #tpu.memory_space<vmem>>, %arg7: memref<32x1xf32, #tpu.memory_space<vmem>>, %arg8: memref<4x32xf32, #tpu.memory_space<vmem>>, %arg9: memref<4x1xf32, #tpu.memory_space<vmem>>, %arg10: memref<1x128xi32, #tpu.memory_space<vmem>>) attributes {dimension_semantics = [#tpu.dimension_semantics<parallel>], iteration_bounds = array<i64: 1>, scalar_prefetch = 0 : i64, scratch_operands = 0 : i64, tpu.core_type = #tpu.core_type<tc>, window_params = [{transform_indices = @transform_0, window_bounds = array<i64: 5, 128>}, {pipeline_mode = #tpu.pipeline_mode<synchronous>, transform_indices = @transform_1, window_bounds = array<i64: 64, 5>}, {pipeline_mode = #tpu.pipeline_mode<synchronous>, transform_indices = @transform_2, window_bounds = array<i64: 64, 1>}, {pipeline_mode = #tpu.pipeline_mode<synchronous>, transform_indices = @transform_3, window_bounds = array<i64: 32, 64>}, {pipeline_mode = #tpu.pipeline_mode<synchronous>, transform_indices = @transform_4, window_bounds = array<i64: 32, 1>}, {pipeline_mode = #tpu.pipeline_mode<synchronous>, transform_indices = @transform_5, window_bounds = array<i64: 32, 32>}, {pipeline_mode = #tpu.pipeline_mode<synchronous>, transform_indices = @transform_6, window_bounds = array<i64: 32, 1>}, {pipeline_mode = #tpu.pipeline_mode<synchronous>, transform_indices = @transform_7, window_bounds = array<i64: 4, 32>}, {pipeline_mode = #tpu.pipeline_mode<synchronous>, transform_indices = @transform_8, window_bounds = array<i64: 4, 1>}, {transform_indices = @transform_9, window_bounds = array<i64: 1, 128>}]} {
    %c0 = arith.constant 0 : index
    %c0_0 = arith.constant 0 : index
    %0 = vector.load %arg1[%c0, %c0_0] : memref<5x128xf32, #tpu.memory_space<vmem>>, vector<5x128xf32>
    %c0_1 = arith.constant 0 : index
    %c0_2 = arith.constant 0 : index
    %1 = vector.load %arg2[%c0_1, %c0_2] : memref<64x5xf32, #tpu.memory_space<vmem>>, vector<64x5xf32>
    %cst = arith.constant dense<0.000000e+00> : vector<64x128xf32>
    %2 = tpu.matmul %1, %0, %cst {dimension_numbers = #tpu.dot_dimension_numbers<[1], [0], [0], [1], [0, 0, 1, 1], [], []>} : vector<64x5xf32>, vector<5x128xf32>, vector<64x128xf32> -> vector<64x128xf32>
    %c0_3 = arith.constant 0 : index
    %c0_4 = arith.constant 0 : index
    %3 = vector.load %arg3[%c0_3, %c0_4] : memref<64x1xf32, #tpu.memory_space<vmem>>, vector<64x1xf32>
    %4 = vector.broadcast %3 : vector<64x1xf32> to vector<64x128xf32>
    %5 = arith.addf %2, %4 : vector<64x128xf32>
    %cst_5 = arith.constant 0.000000e+00 : f32
    %6 = vector.broadcast %cst_5 : f32 to vector<64x128xf32>
    %7 = arith.maximumf %5, %6 : vector<64x128xf32>
    %c0_6 = arith.constant 0 : index
    %c0_7 = arith.constant 0 : index
    %8 = vector.load %arg4[%c0_6, %c0_7] : memref<32x64xf32, #tpu.memory_space<vmem>>, vector<32x64xf32>
    %cst_8 = arith.constant dense<0.000000e+00> : vector<32x128xf32>
    %9 = tpu.matmul %8, %7, %cst_8 {dimension_numbers = #tpu.dot_dimension_numbers<[1], [0], [0], [1], [0, 0, 1, 1], [], []>} : vector<32x64xf32>, vector<64x128xf32>, vector<32x128xf32> -> vector<32x128xf32>
    %c0_9 = arith.constant 0 : index
    %c0_10 = arith.constant 0 : index
    %10 = vector.load %arg5[%c0_9, %c0_10] : memref<32x1xf32, #tpu.memory_space<vmem>>, vector<32x1xf32>
    %11 = vector.broadcast %10 : vector<32x1xf32> to vector<32x128xf32>
    %12 = arith.addf %9, %11 : vector<32x128xf32>
    %cst_11 = arith.constant 0.000000e+00 : f32
    %13 = vector.broadcast %cst_11 : f32 to vector<32x128xf32>
    %14 = arith.maximumf %12, %13 : vector<32x128xf32>
    %c0_12 = arith.constant 0 : index
    %c0_13 = arith.constant 0 : index
    %15 = vector.load %arg6[%c0_12, %c0_13] : memref<32x32xf32, #tpu.memory_space<vmem>>, vector<32x32xf32>
    %cst_14 = arith.constant dense<0.000000e+00> : vector<32x128xf32>
    %16 = tpu.matmul %15, %14, %cst_14 {dimension_numbers = #tpu.dot_dimension_numbers<[1], [0], [0], [1], [0, 0, 1, 1], [], []>} : vector<32x32xf32>, vector<32x128xf32>, vector<32x128xf32> -> vector<32x128xf32>
    %c0_15 = arith.constant 0 : index
    %c0_16 = arith.constant 0 : index
    %17 = vector.load %arg7[%c0_15, %c0_16] : memref<32x1xf32, #tpu.memory_space<vmem>>, vector<32x1xf32>
    %18 = vector.broadcast %17 : vector<32x1xf32> to vector<32x128xf32>
    %19 = arith.addf %16, %18 : vector<32x128xf32>
    %cst_17 = arith.constant 0.000000e+00 : f32
    %20 = vector.broadcast %cst_17 : f32 to vector<32x128xf32>
    %21 = arith.maximumf %19, %20 : vector<32x128xf32>
    %c0_18 = arith.constant 0 : index
    %c0_19 = arith.constant 0 : index
    %22 = vector.load %arg8[%c0_18, %c0_19] : memref<4x32xf32, #tpu.memory_space<vmem>>, vector<4x32xf32>
    %cst_20 = arith.constant dense<0.000000e+00> : vector<4x128xf32>
    %23 = tpu.matmul %22, %21, %cst_20 {dimension_numbers = #tpu.dot_dimension_numbers<[1], [0], [0], [1], [0, 0, 1, 1], [], []>} : vector<4x32xf32>, vector<32x128xf32>, vector<4x128xf32> -> vector<4x128xf32>
    %c0_21 = arith.constant 0 : index
    %c0_22 = arith.constant 0 : index
    %24 = vector.load %arg9[%c0_21, %c0_22] : memref<4x1xf32, #tpu.memory_space<vmem>>, vector<4x1xf32>
    %25 = vector.broadcast %24 : vector<4x1xf32> to vector<4x128xf32>
    %26 = arith.addf %23, %25 : vector<4x128xf32>
    %27 = tpu.iota {dimensions = array<i32: 0>} : vector<4x128xi32>
    %cst_23 = arith.constant dense<0xFF800000> : vector<128xf32>
    %28 = vector.multi_reduction <maximumf>, %26, %cst_23 [0] : vector<4x128xf32> to vector<128xf32>
    %29 = vector.shape_cast %28 : vector<128xf32> to vector<1x128xf32>
    %30 = vector.broadcast %29 : vector<1x128xf32> to vector<4x128xf32>
    %31 = arith.cmpf oeq, %26, %30 : vector<4x128xf32>
    %c4_i32 = arith.constant 4 : i32
    %32 = vector.broadcast %c4_i32 : i32 to vector<4x128xi32>
    %33 = arith.select %31, %27, %32 : vector<4x128xi1>, vector<4x128xi32>
    %cst_24 = arith.constant dense<2147483647> : vector<128xi32>
    %34 = vector.multi_reduction <minsi>, %33, %cst_24 [0] : vector<4x128xi32> to vector<128xi32>
    %35 = vector.shape_cast %34 : vector<128xi32> to vector<1x128xi32>
    %c0_25 = arith.constant 0 : index
    %c0_26 = arith.constant 0 : index
    %36 = vector.load %arg10[%c0_25, %c0_26] : memref<1x128xi32, #tpu.memory_space<vmem>>, vector<1x128xi32>
    tpu.vector_store %arg10[%c0_25, %c0_26], %35 {strides = array<i32>} : memref<1x128xi32, #tpu.memory_space<vmem>>, vector<1x128xi32>,
    return
  }
  func.func @transform_0(%arg0: i32) -> (i32, i32) {
    %c0_i32 = arith.constant 0 : i32
    %c0_i32_0 = arith.constant 0 : i32
    return %c0_i32, %arg0 : i32, i32
  }
  func.func @transform_1(%arg0: i32) -> (i32, i32) {
    %c0_i32 = arith.constant 0 : i32
    %c0_i32_0 = arith.constant 0 : i32
    %c0_i32_1 = arith.constant 0 : i32
    return %c0_i32, %c0_i32_0 : i32, i32
  }
  func.func @transform_2(%arg0: i32) -> (i32, i32) {
    %c0_i32 = arith.constant 0 : i32
    %c0_i32_0 = arith.constant 0 : i32
    %c0_i32_1 = arith.constant 0 : i32
    return %c0_i32, %c0_i32_0 : i32, i32
  }
  func.func @transform_3(%arg0: i32) -> (i32, i32) {
    %c0_i32 = arith.constant 0 : i32
    %c0_i32_0 = arith.constant 0 : i32
    %c0_i32_1 = arith.constant 0 : i32
    return %c0_i32, %c0_i32_0 : i32, i32
  }
  func.func @transform_4(%arg0: i32) -> (i32, i32) {
    %c0_i32 = arith.constant 0 : i32
    %c0_i32_0 = arith.constant 0 : i32
    %c0_i32_1 = arith.constant 0 : i32
    return %c0_i32, %c0_i32_0 : i32, i32
  }
  func.func @transform_5(%arg0: i32) -> (i32, i32) {
    %c0_i32 = arith.constant 0 : i32
    %c0_i32_0 = arith.constant 0 : i32
    %c0_i32_1 = arith.constant 0 : i32
    return %c0_i32, %c0_i32_0 : i32, i32
  }
  func.func @transform_6(%arg0: i32) -> (i32, i32) {
    %c0_i32 = arith.constant 0 : i32
    %c0_i32_0 = arith.constant 0 : i32
    %c0_i32_1 = arith.constant 0 : i32
    return %c0_i32, %c0_i32_0 : i32, i32
  }
  func.func @transform_7(%arg0: i32) -> (i32, i32) {
    %c0_i32 = arith.constant 0 : i32
    %c0_i32_0 = arith.constant 0 : i32
    %c0_i32_1 = arith.constant 0 : i32
    return %c0_i32, %c0_i32_0 : i32, i32
  }
  func.func @transform_8(%arg0: i32) -> (i32, i32) {
    %c0_i32 = arith.constant 0 : i32
    %c0_i32_0 = arith.constant 0 : i32
    %c0_i32_1 = arith.constant 0 : i32
    return %c0_i32, %c0_i32_0 : i32, i32
  }
  func.func @transform_9(%arg0: i32) -> (i32, i32) {
    %c0_i32 = arith.constant 0 : i32
    %c0_i32_0 = arith.constant 0 : i32
    return %c0_i32, %arg0 : i32, i32
  }
}

</mosaic_0001>

<llo_original>
// kernel: tpu_custom_call.1
$region0: #{tpu_custom_call.1}
  #allocation0 [shape = 'u32[]', space=smem, size = 0x4, offset = 0x4, fixed_abs, tag = 'smem constant byte address 0x4 - core index']
  #allocation1 [shape = 'u32[144,128]{1,0:T(1,128)}', space=vmem, size = 0x12000, scoped, tag = 'internal scratch']
  %s0 = inlined_call_operand.vmem [shape: f32[5,128], index: 0, kind: input, shape index: {}]
  %s1 = inlined_call_operand.vmem [shape: f32[64,5], index: 1, kind: input, shape index: {}]
  %s2 = inlined_call_operand.vmem [shape: f32[64,1], index: 2, kind: input, shape index: {}]
  %s3 = inlined_call_operand.vmem [shape: f32[32,64], index: 3, kind: input, shape index: {}]
  %s4 = inlined_call_operand.vmem [shape: f32[32,1], index: 4, kind: input, shape index: {}]
  %s5 = inlined_call_operand.vmem [shape: f32[32,32], index: 5, kind: input, shape index: {}]
  %s6 = inlined_call_operand.vmem [shape: f32[32,1], index: 6, kind: input, shape index: {}]
  %s7 = inlined_call_operand.vmem [shape: f32[4,32], index: 7, kind: input, shape index: {}]
  %s8 = inlined_call_operand.vmem [shape: f32[4,1], index: 8, kind: input, shape index: {}]
  %s9 = inlined_call_operand.hbm [shape: s32[1,128], index: 9, kind: output, shape index: {}]
  %s10 = sld [smem:[#allocation0]]
  $region46: #{tpu_custom_call.1} parent=0
    _
  %s12 = ssub.s32 1, %s10
  %s13 = scalar_select 0, %s12, %s10
  $region1: #{tpu_custom_call.1} parent=0
    #allocation2 [shape = 'u8[512]{0}', space=vmem, size = 0x400, scoped, tag = 'output window, operand 0, single buffered']
    #allocation3 [shape = 's32[1]{0}', space=sflag, size = 0x4, scoped, tag = 'scoped memory for tpu_custom_call.1']
    %14 = vsyncpa [#allocation3], 0
    // Predicated region
    $region2: #{tpu_custom_call.1} parent=1 // pred_check
      _
    $region3: #{tpu_custom_call.1} parent=1 // pred_check_branch
      %16 = sbr.rel (0) target = $region5
    $region4: #{tpu_custom_call.1} parent=1 // pred_region
      _
    $region5: #{tpu_custom_call.1} parent=1 // pred_fallthru
      _
    // Predicated region
    $region6: #{tpu_custom_call.1} parent=1 // pred_check
      _
    $region7: #{tpu_custom_call.1} parent=1 // pred_check_branch
      %18 = sbr.rel (0) target = $region9
    $region8: #{tpu_custom_call.1} parent=1 // pred_region
      _
    $region9: #{tpu_custom_call.1} parent=1 // pred_fallthru
      _
    // Predicated region
    $region10: #{tpu_custom_call.1} parent=1 // pred_check
      _
    $region11: #{tpu_custom_call.1} parent=1 // pred_check_branch
      %20 = sbr.rel (0) target = $region13
    $region12: #{tpu_custom_call.1} parent=1 // pred_region
      _
    $region13: #{tpu_custom_call.1} parent=1 // pred_fallthru
      _
    // Predicated region
    $region14: #{tpu_custom_call.1} parent=1 // pred_check
      _
    $region15: #{tpu_custom_call.1} parent=1 // pred_check_branch
      %22 = sbr.rel (0) target = $region17
    $region16: #{tpu_custom_call.1} parent=1 // pred_region
      _
    $region17: #{tpu_custom_call.1} parent=1 // pred_fallthru
      _
    // Predicated region
    $region18: #{tpu_custom_call.1} parent=1 // pred_check
      _
    $region19: #{tpu_custom_call.1} parent=1 // pred_check_branch
      %24 = sbr.rel (0) target = $region21
    $region20: #{tpu_custom_call.1} parent=1 // pred_region
      _
    $region21: #{tpu_custom_call.1} parent=1 // pred_fallthru
      _
    // Predicated region
    $region22: #{tpu_custom_call.1} parent=1 // pred_check
      _
    $region23: #{tpu_custom_call.1} parent=1 // pred_check_branch
      %26 = sbr.rel (0) target = $region25
    $region24: #{tpu_custom_call.1} parent=1 // pred_region
      _
    $region25: #{tpu_custom_call.1} parent=1 // pred_fallthru
      _
    // Predicated region
    $region26: #{tpu_custom_call.1} parent=1 // pred_check
      _
    $region27: #{tpu_custom_call.1} parent=1 // pred_check_branch
      %28 = sbr.rel (0) target = $region29
    $region28: #{tpu_custom_call.1} parent=1 // pred_region
      _
    $region29: #{tpu_custom_call.1} parent=1 // pred_fallthru
      _
    // Predicated region
    $region30: #{tpu_custom_call.1} parent=1 // pred_check
      _
    $region31: #{tpu_custom_call.1} parent=1 // pred_check_branch
      %30 = sbr.rel (0) target = $region33
    $region32: #{tpu_custom_call.1} parent=1 // pred_region
      _
    $region33: #{tpu_custom_call.1} parent=1 // pred_fallthru
      _
    // Predicated region
    $region34: #{tpu_custom_call.1} parent=1 // pred_check
      _
    $region35: #{tpu_custom_call.1} parent=1 // pred_check_branch
      %32 = sbr.rel (0) target = $region37
    $region36: #{tpu_custom_call.1} parent=1 // pred_region
      _
    $region37: #{tpu_custom_call.1} parent=1 // pred_fallthru
      _
    %v33 = vld [vmem:[%s0] sm:$0x1f]
    %v34 = vld [vmem:[%s1] sm:$0xff]
    %v35 = vld [vmem:[%s1 + $0x8] sm:$0xff]
    %v36 = vld [vmem:[%s1 + $0x10] sm:$0xff]
    %v37 = vld [vmem:[%s1 + $0x18] sm:$0xff]
    %v38 = vld [vmem:[%s1 + $0x20] sm:$0xff]
    %v39 = vld [vmem:[%s1 + $0x28] sm:$0xff]
    %v40 = vld [vmem:[%s1 + $0x30] sm:$0xff]
    %v41 = vld [vmem:[%s1 + $0x38] sm:$0xff]
    %v42 = vld [vmem:[%s2] sm:$0xff]
    %v43 = vld [vmem:[%s2 + $0x8] sm:$0xff]
    %v44 = vld [vmem:[%s2 + $0x10] sm:$0xff]
    %v45 = vld [vmem:[%s2 + $0x18] sm:$0xff]
    %v46 = vld [vmem:[%s2 + $0x20] sm:$0xff]
    %v47 = vld [vmem:[%s2 + $0x28] sm:$0xff]
    %v48 = vld [vmem:[%s2 + $0x30] sm:$0xff]
    %v49 = vld [vmem:[%s2 + $0x38] sm:$0xff]
    %51 = vset.pattern.permute.xlu0 0
    %52 = vperm.xlu0 %51, %v42
    %v53 = vpop.permute.xlu0 %52
    %56 = vset.pattern.permute.xlu0 0
    %57 = vperm.xlu0 %56, %v43
    %v58 = vpop.permute.xlu0 %57
    %61 = vset.pattern.permute.xlu0 0
    %62 = vperm.xlu0 %61, %v44
    %v63 = vpop.permute.xlu0 %62
    %66 = vset.pattern.permute.xlu0 0
    %67 = vperm.xlu0 %66, %v45
    %v68 = vpop.permute.xlu0 %67
    %71 = vset.pattern.permute.xlu0 0
    %72 = vperm.xlu0 %71, %v46
    %v73 = vpop.permute.xlu0 %72
    %76 = vset.pattern.permute.xlu0 0
    %77 = vperm.xlu0 %76, %v47
    %v78 = vpop.permute.xlu0 %77
    %81 = vset.pattern.permute.xlu0 0
    %82 = vperm.xlu0 %81, %v48
    %v83 = vpop.permute.xlu0 %82
    %86 = vset.pattern.permute.xlu0 0
    %87 = vperm.xlu0 %86, %v49
    %v88 = vpop.permute.xlu0 %87
    %vm90 = vcmask 39936
    %v92 = vsel %vm90, %v34, 0
    %v95 = vsel %vm90, %v35, 0
    %v98 = vsel %vm90, %v36, 0
    %v101 = vsel %vm90, %v37, 0
    %v104 = vsel %vm90, %v38, 0
    %v107 = vsel %vm90, %v39, 0
    %v110 = vsel %vm90, %v40, 0
    %v113 = vsel %vm90, %v41, 0
    %vm115 = vcmask 1044480
    %v117 = vsel %vm115, %v33, 0
    %119 = vmatprep.subr.mxu0 0.0
    %120 = vmatpush1.msra.mxu0 0.0
    %121 = vmatprep.subr.mxu0 0.0
    %122 = vmatpush1.msra.mxu0 0.0
    %123 = vmatprep.subr.mxu0 0.0
    %124 = vmatpush1.msra.mxu0 0.0
    %125 = vmatprep.subr.mxu0 0.0
    %126 = vmatpush1.msra.mxu0 0.0
    %127 = vmatprep.subr.mxu0 0.0
    %128 = vmatpush1.msra.mxu0 0.0
    %129 = vmatprep.subr.mxu0 0.0
    %130 = vmatpush1.msra.mxu0 0.0
    %131 = vmatprep.subr.mxu0 0.0
    %132 = vmatpush1.msra.mxu0 0.0
    %133 = vmatprep.subr.mxu0 0.0
    %134 = vmatpush1.msra.mxu0 0.0
    %135 = vmatprep.subr.mxu0 0.0
    %136 = vmatpush1.msra.mxu0 0.0
    %137 = vmatprep.subr.mxu0 0.0
    %138 = vmatpush1.msra.mxu0 0.0
    %139 = vmatprep.subr.mxu0 0.0
    %140 = vmatpush1.msra.mxu0 0.0
    %141 = vmatprep.subr.mxu0 0.0
    %142 = vmatpush1.msra.mxu0 0.0
    %143 = vmatprep.subr.mxu0 0.0
    %144 = vmatpush1.msra.mxu0 0.0
    %145 = vmatprep.subr.mxu0 0.0
    %146 = vmatpush1.msra.mxu0 0.0
    %147 = vmatprep.subr.mxu0 0.0
    %148 = vmatpush1.msra.mxu0 0.0
    %149 = vmatprep.subr.mxu0 0.0
    %150 = vmatpush1.msra.mxu0 %v117
    %151 = vmatprep.subr.mxu0 0.0
    %152 = vmatpush2.msra.mxu0 0.0
    %153 = vmatprep.subr.mxu0 0.0
    %154 = vmatpush2.msra.mxu0 0.0
    %155 = vmatprep.subr.mxu0 0.0
    %156 = vmatpush2.msra.mxu0 0.0
    %157 = vmatprep.subr.mxu0 0.0
    %158 = vmatpush2.msra.mxu0 0.0
    %159 = vmatprep.subr.mxu0 0.0
    %160 = vmatpush2.msra.mxu0 0.0
    %161 = vmatprep.subr.mxu0 0.0
    %162 = vmatpush2.msra.mxu0 0.0
    %163 = vmatprep.subr.mxu0 0.0
    %164 = vmatpush2.msra.mxu0 0.0
    %165 = vmatprep.subr.mxu0 0.0
    %166 = vmatpush2.msra.mxu0 0.0
    %167 = vmatprep.subr.mxu0 0.0
    %168 = vmatpush2.msra.mxu0 0.0
    %169 = vmatprep.subr.mxu0 0.0
    %170 = vmatpush2.msra.mxu0 0.0
    %171 = vmatprep.subr.mxu0 0.0
    %172 = vmatpush2.msra.mxu0 0.0
    %173 = vmatprep.subr.mxu0 0.0
    %174 = vmatpush2.msra.mxu0 0.0
    %175 = vmatprep.subr.mxu0 0.0
    %176 = vmatpush2.msra.mxu0 0.0
    %177 = vmatprep.subr.mxu0 0.0
    %178 = vmatpush2.msra.mxu0 0.0
    %179 = vmatprep.subr.mxu0 0.0
    %180 = vmatpush2.msra.mxu0 0.0
    %181 = vmatprep.subr.mxu0 0.0
    %182 = vmatpush2.msra.mxu0 0.0
    %183 = vmatprep.mubr.f32.mxu0 0.0
    %184 = vmatmul.mubr.f32.gmra.mxu0 %v92
    %v185 = vpop.f32.mrf.mxu0
    %v186 = vadd.f32 %v53, %v185
    %v187 = vpop.f32.mrf.mxu0
    %188 = vmatprep.mubr.f32.mxu0 0.0
    %189 = vmatmul.mubr.f32.gmra.mxu0 %v95
    %v190 = vpop.f32.mrf.mxu0
    %v191 = vadd.f32 %v58, %v190
    %v192 = vpop.f32.mrf.mxu0
    %193 = vmatprep.mubr.f32.mxu0 0.0
    %194 = vmatmul.mubr.f32.gmra.mxu0 %v98
    %v195 = vpop.f32.mrf.mxu0
    %v196 = vadd.f32 %v63, %v195
    %v197 = vpop.f32.mrf.mxu0
    %198 = vmatprep.mubr.f32.mxu0 0.0
    %199 = vmatmul.mubr.f32.gmra.mxu0 %v101
    %v200 = vpop.f32.mrf.mxu0
    %v201 = vadd.f32 %v68, %v200
    %v202 = vpop.f32.mrf.mxu0
    %203 = vmatprep.mubr.f32.mxu0 0.0
    %204 = vmatmul.mubr.f32.gmra.mxu0 %v104
    %v205 = vpop.f32.mrf.mxu0
    %v206 = vadd.f32 %v73, %v205
    %v207 = vpop.f32.mrf.mxu0
    %208 = vmatprep.mubr.f32.mxu0 0.0
    %209 = vmatmul.mubr.f32.gmra.mxu0 %v107
    %v210 = vpop.f32.mrf.mxu0
    %v211 = vadd.f32 %v78, %v210
    %v212 = vpop.f32.mrf.mxu0
    %213 = vmatprep.mubr.f32.mxu0 0.0
    %214 = vmatmul.mubr.f32.gmra.mxu0 %v110
    %v215 = vpop.f32.mrf.mxu0
    %v216 = vadd.f32 %v83, %v215
    %v217 = vpop.f32.mrf.mxu0
    %218 = vmatprep.mubr.f32.mxu0 0.0
    %219 = vmatmul.mubr.f32.gmra.mxu0 %v113
    %v220 = vpop.f32.mrf.mxu0
    %v221 = vadd.f32 %v88, %v220
    %v222 = vpop.f32.mrf.mxu0
    %223 = vdwg.mxu0
    %v224 = vmax.f32 %v186, 0.0
    %v225 = vmax.f32 %v191, 0.0
    %v226 = vmax.f32 %v196, 0.0
    %v227 = vmax.f32 %v201, 0.0
    %v228 = vmax.f32 %v206, 0.0
    %v229 = vmax.f32 %v211, 0.0
    %v230 = vmax.f32 %v216, 0.0
    %v231 = vmax.f32 %v221, 0.0
    %v232 = vld [vmem:[%s3] sm:$0xff]
    %v233 = vld [vmem:[%s3 + $0x8] sm:$0xff]
    %v234 = vld [vmem:[%s3 + $0x10] sm:$0xff]
    %v235 = vld [vmem:[%s3 + $0x18] sm:$0xff]
    %v236 = vld [vmem:[%s4] sm:$0xff]
    %v237 = vld [vmem:[%s4 + $0x8] sm:$0xff]
    %v238 = vld [vmem:[%s4 + $0x10] sm:$0xff]
    %v239 = vld [vmem:[%s4 + $0x18] sm:$0xff]
    %241 = vset.pattern.permute.xlu0 0
    %242 = vperm.xlu0 %241, %v236
    %v243 = vpop.permute.xlu0 %242
    %246 = vset.pattern.permute.xlu0 0
    %247 = vperm.xlu0 %246, %v237
    %v248 = vpop.permute.xlu0 %247
    %251 = vset.pattern.permute.xlu0 0
    %252 = vperm.xlu0 %251, %v238
    %v253 = vpop.permute.xlu0 %252
    %256 = vset.pattern.permute.xlu0 0
    %257 = vperm.xlu0 %256, %v239
    %v258 = vpop.permute.xlu0 %257
    %vm260 = vcmask 523264
    %v262 = vsel %vm260, %v232, 0
    %v265 = vsel %vm260, %v233, 0
    %v268 = vsel %vm260, %v234, 0
    %v271 = vsel %vm260, %v235, 0
    %273 = vmatprep.subr.mxu0 0.0
    %274 = vmatpush1.msra.mxu0 0.0
    %275 = vmatprep.subr.mxu0 0.0
    %276 = vmatpush1.msra.mxu0 0.0
    %277 = vmatprep.subr.mxu0 0.0
    %278 = vmatpush1.msra.mxu0 0.0
    %279 = vmatprep.subr.mxu0 0.0
    %280 = vmatpush1.msra.mxu0 0.0
    %281 = vmatprep.subr.mxu0 0.0
    %282 = vmatpush1.msra.mxu0 0.0
    %283 = vmatprep.subr.mxu0 0.0
    %284 = vmatpush1.msra.mxu0 0.0
    %285 = vmatprep.subr.mxu0 0.0
    %286 = vmatpush1.msra.mxu0 0.0
    %287 = vmatprep.subr.mxu0 0.0
    %288 = vmatpush1.msra.mxu0 0.0
    %289 = vmatprep.subr.mxu0 0.0
    %290 = vmatpush1.msra.mxu0 %v231
    %291 = vmatprep.subr.mxu0 0.0
    %292 = vmatpush1.msra.mxu0 %v230
    %293 = vmatprep.subr.mxu0 0.0
    %294 = vmatpush1.msra.mxu0 %v229
    %295 = vmatprep.subr.mxu0 0.0
    %296 = vmatpush1.msra.mxu0 %v228
    %297 = vmatprep.subr.mxu0 0.0
    %298 = vmatpush1.msra.mxu0 %v227
    %299 = vmatprep.subr.mxu0 0.0
    %300 = vmatpush1.msra.mxu0 %v226
    %301 = vmatprep.subr.mxu0 0.0
    %302 = vmatpush1.msra.mxu0 %v225
    %303 = vmatprep.subr.mxu0 0.0
    %304 = vmatpush1.msra.mxu0 %v224
    %305 = vmatprep.subr.mxu0 0.0
    %306 = vmatpush2.msra.mxu0 0.0
    %307 = vmatprep.subr.mxu0 0.0
    %308 = vmatpush2.msra.mxu0 0.0
    %309 = vmatprep.subr.mxu0 0.0
    %310 = vmatpush2.msra.mxu0 0.0
    %311 = vmatprep.subr.mxu0 0.0
    %312 = vmatpush2.msra.mxu0 0.0
    %313 = vmatprep.subr.mxu0 0.0
    %314 = vmatpush2.msra.mxu0 0.0
    %315 = vmatprep.subr.mxu0 0.0
    %316 = vmatpush2.msra.mxu0 0.0
    %317 = vmatprep.subr.mxu0 0.0
    %318 = vmatpush2.msra.mxu0 0.0
    %319 = vmatprep.subr.mxu0 0.0
    %320 = vmatpush2.msra.mxu0 0.0
    %321 = vmatprep.subr.mxu0 0.0
    %322 = vmatpush2.msra.mxu0 0.0
    %323 = vmatprep.subr.mxu0 0.0
    %324 = vmatpush2.msra.mxu0 0.0
    %325 = vmatprep.subr.mxu0 0.0
    %326 = vmatpush2.msra.mxu0 0.0
    %327 = vmatprep.subr.mxu0 0.0
    %328 = vmatpush2.msra.mxu0 0.0
    %329 = vmatprep.subr.mxu0 0.0
    %330 = vmatpush2.msra.mxu0 0.0
    %331 = vmatprep.subr.mxu0 0.0
    %332 = vmatpush2.msra.mxu0 0.0
    %333 = vmatprep.subr.mxu0 0.0
    %334 = vmatpush2.msra.mxu0 0.0
    %335 = vmatprep.subr.mxu0 0.0
    %336 = vmatpush2.msra.mxu0 0.0
    %337 = vmatprep.mubr.f32.mxu0 0.0
    %338 = vmatmul.mubr.f32.gmra.mxu0 %v262
    %v339 = vpop.f32.mrf.mxu0
    %v340 = vadd.f32 %v243, %v339
    %v341 = vpop.f32.mrf.mxu0
    %342 = vmatprep.mubr.f32.mxu0 0.0
    %343 = vmatmul.mubr.f32.gmra.mxu0 %v265
    %v344 = vpop.f32.mrf.mxu0
    %v345 = vadd.f32 %v248, %v344
    %v346 = vpop.f32.mrf.mxu0
    %347 = vmatprep.mubr.f32.mxu0 0.0
    %348 = vmatmul.mubr.f32.gmra.mxu0 %v268
    %v349 = vpop.f32.mrf.mxu0
    %v350 = vadd.f32 %v253, %v349
    %v351 = vpop.f32.mrf.mxu0
    %352 = vmatprep.mubr.f32.mxu0 0.0
    %353 = vmatmul.mubr.f32.gmra.mxu0 %v271
    %v354 = vpop.f32.mrf.mxu0
    %v355 = vadd.f32 %v258, %v354
    %v356 = vpop.f32.mrf.mxu0
    %357 = vdwg.mxu0
    %v358 = vmax.f32 %v340, 0.0
    %v359 = vmax.f32 %v345, 0.0
    %v360 = vmax.f32 %v350, 0.0
    %v361 = vmax.f32 %v355, 0.0
    %v362 = vld [vmem:[%s5] sm:$0xff]
    %v363 = vld [vmem:[%s5 + $0x8] sm:$0xff]
    %v364 = vld [vmem:[%s5 + $0x10] sm:$0xff]
    %v365 = vld [vmem:[%s5 + $0x18] sm:$0xff]
    %v366 = vld [vmem:[%s6] sm:$0xff]
    %v367 = vld [vmem:[%s6 + $0x8] sm:$0xff]
    %v368 = vld [vmem:[%s6 + $0x10] sm:$0xff]
    %v369 = vld [vmem:[%s6 + $0x18] sm:$0xff]
    %371 = vset.pattern.permute.xlu0 0
    %372 = vperm.xlu0 %371, %v366
    %v373 = vpop.permute.xlu0 %372
    %376 = vset.pattern.permute.xlu0 0
    %377 = vperm.xlu0 %376, %v367
    %v378 = vpop.permute.xlu0 %377
    %381 = vset.pattern.permute.xlu0 0
    %382 = vperm.xlu0 %381, %v368
    %v383 = vpop.permute.xlu0 %382
    %386 = vset.pattern.permute.xlu0 0
    %387 = vperm.xlu0 %386, %v369
    %v388 = vpop.permute.xlu0 %387
    %vm390 = vcmask 261120
    %v392 = vsel %vm390, %v362, 0
    %v395 = vsel %vm390, %v363, 0
    %v398 = vsel %vm390, %v364, 0
    %v401 = vsel %vm390, %v365, 0
    %403 = vmatprep.subr.mxu0 0.0
    %404 = vmatpush1.msra.mxu0 0.0
    %405 = vmatprep.subr.mxu0 0.0
    %406 = vmatpush1.msra.mxu0 0.0
    %407 = vmatprep.subr.mxu0 0.0
    %408 = vmatpush1.msra.mxu0 0.0
    %409 = vmatprep.subr.mxu0 0.0
    %410 = vmatpush1.msra.mxu0 0.0
    %411 = vmatprep.subr.mxu0 0.0
    %412 = vmatpush1.msra.mxu0 0.0
    %413 = vmatprep.subr.mxu0 0.0
    %414 = vmatpush1.msra.mxu0 0.0
    %415 = vmatprep.subr.mxu0 0.0
    %416 = vmatpush1.msra.mxu0 0.0
    %417 = vmatprep.subr.mxu0 0.0
    %418 = vmatpush1.msra.mxu0 0.0
    %419 = vmatprep.subr.mxu0 0.0
    %420 = vmatpush1.msra.mxu0 0.0
    %421 = vmatprep.subr.mxu0 0.0
    %422 = vmatpush1.msra.mxu0 0.0
    %423 = vmatprep.subr.mxu0 0.0
    %424 = vmatpush1.msra.mxu0 0.0
    %425 = vmatprep.subr.mxu0 0.0
    %426 = vmatpush1.msra.mxu0 0.0
    %427 = vmatprep.subr.mxu0 0.0
    %428 = vmatpush1.msra.mxu0 %v361
    %429 = vmatprep.subr.mxu0 0.0
    %430 = vmatpush1.msra.mxu0 %v360
    %431 = vmatprep.subr.mxu0 0.0
    %432 = vmatpush1.msra.mxu0 %v359
    %433 = vmatprep.subr.mxu0 0.0
    %434 = vmatpush1.msra.mxu0 %v358
    %435 = vmatprep.subr.mxu0 0.0
    %436 = vmatpush2.msra.mxu0 0.0
    %437 = vmatprep.subr.mxu0 0.0
    %438 = vmatpush2.msra.mxu0 0.0
    %439 = vmatprep.subr.mxu0 0.0
    %440 = vmatpush2.msra.mxu0 0.0
    %441 = vmatprep.subr.mxu0 0.0
    %442 = vmatpush2.msra.mxu0 0.0
    %443 = vmatprep.subr.mxu0 0.0
    %444 = vmatpush2.msra.mxu0 0.0
    %445 = vmatprep.subr.mxu0 0.0
    %446 = vmatpush2.msra.mxu0 0.0
    %447 = vmatprep.subr.mxu0 0.0
    %448 = vmatpush2.msra.mxu0 0.0
    %449 = vmatprep.subr.mxu0 0.0
    %450 = vmatpush2.msra.mxu0 0.0
    %451 = vmatprep.subr.mxu0 0.0
    %452 = vmatpush2.msra.mxu0 0.0
    %453 = vmatprep.subr.mxu0 0.0
    %454 = vmatpush2.msra.mxu0 0.0
    %455 = vmatprep.subr.mxu0 0.0
    %456 = vmatpush2.msra.mxu0 0.0
    %457 = vmatprep.subr.mxu0 0.0
    %458 = vmatpush2.msra.mxu0 0.0
    %459 = vmatprep.subr.mxu0 0.0
    %460 = vmatpush2.msra.mxu0 0.0
    %461 = vmatprep.subr.mxu0 0.0
    %462 = vmatpush2.msra.mxu0 0.0
    %463 = vmatprep.subr.mxu0 0.0
    %464 = vmatpush2.msra.mxu0 0.0
    %465 = vmatprep.subr.mxu0 0.0
    %466 = vmatpush2.msra.mxu0 0.0
    %467 = vmatprep.mubr.f32.mxu0 0.0
    %468 = vmatmul.mubr.f32.gmra.mxu0 %v392
    %v469 = vpop.f32.mrf.mxu0
    %v470 = vadd.f32 %v373, %v469
    %v471 = vpop.f32.mrf.mxu0
    %472 = vmatprep.mubr.f32.mxu0 0.0
    %473 = vmatmul.mubr.f32.gmra.mxu0 %v395
    %v474 = vpop.f32.mrf.mxu0
    %v475 = vadd.f32 %v378, %v474
    %v476 = vpop.f32.mrf.mxu0
    %477 = vmatprep.mubr.f32.mxu0 0.0
    %478 = vmatmul.mubr.f32.gmra.mxu0 %v398
    %v479 = vpop.f32.mrf.mxu0
    %v480 = vadd.f32 %v383, %v479
    %v481 = vpop.f32.mrf.mxu0
    %482 = vmatprep.mubr.f32.mxu0 0.0
    %483 = vmatmul.mubr.f32.gmra.mxu0 %v401
    %v484 = vpop.f32.mrf.mxu0
    %v485 = vadd.f32 %v388, %v484
    %v486 = vpop.f32.mrf.mxu0
    %487 = vdwg.mxu0
    %v488 = vmax.f32 %v470, 0.0
    %v489 = vmax.f32 %v475, 0.0
    %v490 = vmax.f32 %v480, 0.0
    %v491 = vmax.f32 %v485, 0.0
    %v492 = vld [vmem:[%s7] sm:$0xf]
    %v493 = vld [vmem:[%s8] sm:$0xf]
    %495 = vset.pattern.permute.xlu0 0
    %496 = vperm.xlu0 %495, %v493
    %v497 = vpop.permute.xlu0 %496
    %v500 = vsel %vm390, %v492, 0
    %502 = vmatprep.subr.mxu0 0.0
    %503 = vmatpush1.msra.mxu0 0.0
    %504 = vmatprep.subr.mxu0 0.0
    %505 = vmatpush1.msra.mxu0 0.0
    %506 = vmatprep.subr.mxu0 0.0
    %507 = vmatpush1.msra.mxu0 0.0
    %508 = vmatprep.subr.mxu0 0.0
    %509 = vmatpush1.msra.mxu0 0.0
    %510 = vmatprep.subr.mxu0 0.0
    %511 = vmatpush1.msra.mxu0 0.0
    %512 = vmatprep.subr.mxu0 0.0
    %513 = vmatpush1.msra.mxu0 0.0
    %514 = vmatprep.subr.mxu0 0.0
    %515 = vmatpush1.msra.mxu0 0.0
    %516 = vmatprep.subr.mxu0 0.0
    %517 = vmatpush1.msra.mxu0 0.0
    %518 = vmatprep.subr.mxu0 0.0
    %519 = vmatpush1.msra.mxu0 0.0
    %520 = vmatprep.subr.mxu0 0.0
    %521 = vmatpush1.msra.mxu0 0.0
    %522 = vmatprep.subr.mxu0 0.0
    %523 = vmatpush1.msra.mxu0 0.0
    %524 = vmatprep.subr.mxu0 0.0
    %525 = vmatpush1.msra.mxu0 0.0
    %526 = vmatprep.subr.mxu0 0.0
    %527 = vmatpush1.msra.mxu0 %v491
    %528 = vmatprep.subr.mxu0 0.0
    %529 = vmatpush1.msra.mxu0 %v490
    %530 = vmatprep.subr.mxu0 0.0
    %531 = vmatpush1.msra.mxu0 %v489
    %532 = vmatprep.subr.mxu0 0.0
    %533 = vmatpush1.msra.mxu0 %v488
    %534 = vmatprep.subr.mxu0 0.0
    %535 = vmatpush2.msra.mxu0 0.0
    %536 = vmatprep.subr.mxu0 0.0
    %537 = vmatpush2.msra.mxu0 0.0
    %538 = vmatprep.subr.mxu0 0.0
    %539 = vmatpush2.msra.mxu0 0.0
    %540 = vmatprep.subr.mxu0 0.0
    %541 = vmatpush2.msra.mxu0 0.0
    %542 = vmatprep.subr.mxu0 0.0
    %543 = vmatpush2.msra.mxu0 0.0
    %544 = vmatprep.subr.mxu0 0.0
    %545 = vmatpush2.msra.mxu0 0.0
    %546 = vmatprep.subr.mxu0 0.0
    %547 = vmatpush2.msra.mxu0 0.0
    %548 = vmatprep.subr.mxu0 0.0
    %549 = vmatpush2.msra.mxu0 0.0
    %550 = vmatprep.subr.mxu0 0.0
    %551 = vmatpush2.msra.mxu0 0.0
    %552 = vmatprep.subr.mxu0 0.0
    %553 = vmatpush2.msra.mxu0 0.0
    %554 = vmatprep.subr.mxu0 0.0
    %555 = vmatpush2.msra.mxu0 0.0
    %556 = vmatprep.subr.mxu0 0.0
    %557 = vmatpush2.msra.mxu0 0.0
    %558 = vmatprep.subr.mxu0 0.0
    %559 = vmatpush2.msra.mxu0 0.0
    %560 = vmatprep.subr.mxu0 0.0
    %561 = vmatpush2.msra.mxu0 0.0
    %562 = vmatprep.subr.mxu0 0.0
    %563 = vmatpush2.msra.mxu0 0.0
    %564 = vmatprep.subr.mxu0 0.0
    %565 = vmatpush2.msra.mxu0 0.0
    %566 = vmatprep.mubr.f32.mxu0 0.0
    %567 = vmatmul.mubr.f32.gmra.mxu0 %v500
    %v568 = vpop.f32.mrf.mxu0
    %v569 = vadd.f32 %v497, %v568
    %v570 = vpop.f32.mrf.mxu0
    %571 = vdwg.mxu0
    %v572 = vlaneseq
    %v573 = vshrl.u32 %v572, 7
    %vm574 = vcmask 1043456
    %v575 = vsel %vm574, %v569, -inf
    %v576 = vrot.slane %v575, 4
    %v577 = vmax.f32 %v575, %v576
    %v578 = vrot.slane %v577, 2
    %v579 = vmax.f32 %v577, %v578
    %v580 = vrot.slane %v579, 1
    %v581 = vmax.f32 %v579, %v580
    %vm582 = vcmp.eq.f32.partialorder %v569, %v581
    %v583 = vsel %vm582, %v573, 4
    %v584 = vsel %vm574, %v583, 2147483647
    %v585 = vrot.slane %v584, 4
    %vm586 = vcmp.lt.s32.totalorder %v584, %v585
    %v587 = vsel %vm586, %v584, %v585
    %v588 = vrot.slane %v587, 2
    %vm589 = vcmp.lt.s32.totalorder %v587, %v588
    %v590 = vsel %vm589, %v587, %v588
    %v591 = vrot.slane %v590, 1
    %vm592 = vcmp.lt.s32.totalorder %v590, %v591
    %v593 = vsel %vm592, %v590, %v591
    %594 = vst [vmem:[#allocation2] sm:$0x1] %v593
    // Predicated region
    $region38: #{tpu_custom_call.1} parent=1 // pred_check
      _
    $region39: #{tpu_custom_call.1} parent=1 // pred_check_branch
      %596 = sbr.rel (0) target = $region41
    $region40: #{tpu_custom_call.1} parent=1 // pred_region
      %s598 = ssub.s32 16, 16
      %599 = vsyncadd [#allocation3], %s598
      %s601 = sshll.u32 [#allocation2], 4
      %s602 = int_to_ptr.vmem [resolvable:$true] %s601
      %604 = dma.vmem_to_hbm [thread:$0]  %s602, 16, %s9, [#allocation3]
    $region41: #{tpu_custom_call.1} parent=1 // pred_fallthru
      _
    // Predicated region
    $region42: #{tpu_custom_call.1} parent=1 // pred_check
      _
    $region43: #{tpu_custom_call.1} parent=1 // pred_check_branch
      %606 = sbr.rel (0) target = $region45
    $region44: #{tpu_custom_call.1} parent=1 // pred_region
      %607 = dma.done [#allocation3], 16
    $region45: #{tpu_custom_call.1} parent=1 // pred_fallthru
      _
    %608 = vsyncpa [#allocation3], 1

</llo_original>
